<compile_context>
chip_gen: v7x
topology: tpu7x:2x2x1
jax: 0.10.0
libtpu: 0.0.40
codegen_flags: <defaults>
</compile_context>

<pallas_src>
import functools

import jax
import jax.numpy as jnp
from jax.experimental import pallas as pl
from jax.experimental.pallas import tpu as pltpu

N_OUT = 5          # linear_2 output width in the PyTorch module
OUT_PAD = 128      # lane-dense padded logits width


def mlp_kernel(node_ref, flow_ref, embh_ref, w1n_ref, b1_ref, w2_ref, b2_ref,
               out_ref, *, B, L, max_flow, out_pad):
    f32 = jnp.float32
    cdt = embh_ref.dtype                      # compute dtype (bf16)

    # Node-feature contribution to the hidden layer, shared across all L slots
    # (equivalent to node_feat.unsqueeze(1).repeat(1, L, 1) + concat-matmul).
    h_base = jnp.dot(node_ref[...], w1n_ref[...],
                     preferred_element_type=f32) + b1_ref[...]      # (B, h)

    embh = embh_ref[...]                      # (max_flow, h) == emb @ W1[:f_dim]
    ids = flow_ref[...]                       # (B, L) int32
    lane_iota = jax.lax.broadcasted_iota(jnp.int32, (B, max_flow), 1)

    acc = jnp.zeros((B, out_pad), f32)
    for l in range(L):                        # L is small: static unroll
        # One-hot gather of the flow-embedding contribution for slot l (MXU).
        onehot = (lane_iota == ids[:, l:l + 1]).astype(cdt)          # (B, max_flow)
        h_l = jnp.dot(onehot, embh, preferred_element_type=f32) + h_base
        h_l = jnp.maximum(h_l, 0.0).astype(cdt)                      # relu
        # Accumulate h[:, l, :] @ W2[l*h:(l+1)*h, :]  (no (B, L*h) reshape).
        acc = acc + jnp.dot(h_l, w2_ref[l], preferred_element_type=f32)

    logits = acc + b2_ref[...]                # pad columns carry -1e9 bias
    m = jnp.max(logits, axis=-1, keepdims=True)
    e = jnp.exp(logits - m)                   # pad columns -> exp(~-1e9) == 0
    denom = jnp.sum(e, axis=-1, keepdims=True)
    out_ref[...] = e * pl.reciprocal(denom, approx=True)


def prepare_params(params, *, out_pad=OUT_PAD, compute_dtype=jnp.bfloat16):
    """One-time layout/dtype prep: fold emb into W1's flow half, pad W2/b2."""
    emb, w1, b1, w2, b2 = params
    max_flow, f_dim = emb.shape
    h_dim = b1.shape[-1]
    L = w2.shape[0] // h_dim

    # emb @ W1[:f_dim]  -> per-id hidden-layer contribution table.
    emb_h = (emb @ w1[:f_dim]).astype(compute_dtype)                # (max_flow, h)
    w1n = w1[f_dim:].astype(compute_dtype)                          # (in_dim, h)
    b1p = b1.reshape(1, h_dim).astype(jnp.float32)                  # (1, h)

    w2p = jnp.zeros((L, h_dim, out_pad), compute_dtype)
    w2p = w2p.at[:, :, :N_OUT].set(w2.reshape(L, h_dim, N_OUT).astype(compute_dtype))
    b2p = jnp.full((1, out_pad), -1e9, jnp.float32)
    b2p = b2p.at[:, :N_OUT].set(b2.reshape(1, N_OUT).astype(jnp.float32))
    return emb_h, w1n, b1p, w2p, b2p


def mlp_forward(node_feat, flow_feat, prepared):
    emb_h, w1n, b1, w2p, b2p = prepared
    B = node_feat.shape[0]
    max_flow, _ = emb_h.shape
    L, _, out_pad = w2p.shape
    cdt = emb_h.dtype

    kernel = functools.partial(mlp_kernel, B=B, L=L, max_flow=max_flow,
                               out_pad=out_pad)
    out_padded = pl.pallas_call(
        kernel,
        out_shape=jax.ShapeDtypeStruct((B, out_pad), jnp.float32),
        in_specs=[pl.BlockSpec(memory_space=pltpu.MemorySpace.VMEM)] * 7,
        out_specs=pl.BlockSpec(memory_space=pltpu.MemorySpace.VMEM),
    )(node_feat.astype(cdt), flow_feat.astype(jnp.int32),
      emb_h, w1n, b1, w2p, b2p)
    # TODO(synk): if B is scaled up, add a grid over the batch dim with
    # dimension_semantics=("parallel",) and size batch blocks for VMEM
    # (64 MiB on v7x, 128 MiB on v5e/v6e).
    return out_padded[:, :N_OUT]


def init_params(key, in_dim, h_dim, f_dim, max_flow, L):
    k_emb, k_w1, k_b1, k_w2, k_b2 = jax.random.split(key, 5)
    emb = jax.random.normal(k_emb, (max_flow, f_dim), jnp.float32)
    # nn.Linear stores (out, in); we keep (in, out) so the math is x @ W.
    w1 = jax.random.normal(k_w1, (f_dim + in_dim, h_dim), jnp.float32) * 0.1
    b1 = jax.random.normal(k_b1, (1, h_dim), jnp.float32) * 0.1
    w2 = jax.random.normal(k_w2, (L * h_dim, N_OUT), jnp.float32) * 0.1
    b2 = jax.random.normal(k_b2, (1, N_OUT), jnp.float32) * 0.1
    return emb, w1, b1, w2, b2


def mlp_ref(node_feat, flow_feat, params, *, L, h_dim):
    emb, w1, b1, w2, b2 = params
    B, in_dim = node_feat.shape
    flow_emb = jnp.take(emb, flow_feat, axis=0)
    node_rep = jnp.broadcast_to(node_feat[:, None, :], (B, L, in_dim))
    x = jnp.concatenate([flow_emb, node_rep], axis=-1)
    h = jax.nn.relu(x @ w1 + b1[0])
    logits = h.reshape(B, L * h_dim) @ w2 + b2[0]
    return jax.nn.softmax(logits, axis=1)


if __name__ == "__main__":
    B, L = 4, 8
    in_dim, f_dim, h_dim, max_flow = 16, 16, 32, 10

    key = jax.random.PRNGKey(0)
    k_params, k_node, k_flow = jax.random.split(key, 3)

    params = init_params(k_params, in_dim, h_dim, f_dim, max_flow, L)
    node_feat = jax.random.normal(k_node, (B, in_dim), jnp.float32)
    flow_feat = jax.random.randint(k_flow, (B, L), 0, max_flow, jnp.int32)

    prepared = prepare_params(params)          # one-time weight prep
    fwd = jax.jit(mlp_forward)

    out = jax.block_until_ready(fwd(node_feat, flow_feat, prepared))

    ref = mlp_ref(node_feat, flow_feat, params, L=L, h_dim=h_dim)
    assert out.shape == (B, N_OUT)
    assert jnp.allclose(out, ref, atol=1e-2, rtol=1e-2), (out, ref)
    assert jnp.allclose(jnp.sum(out, axis=1), 1.0, atol=5e-3)

    print("KERNEL_OK")
</pallas_src>

<mosaic_0001>
module attributes {stable_mosaic.version = 11 : i64} {
  func.func @mlp_kernel(%arg0: memref<4x16xbf16, #tpu.memory_space<vmem>>, %arg1: memref<4x8xi32, #tpu.memory_space<vmem>>, %arg2: memref<10x32xbf16, #tpu.memory_space<vmem>>, %arg3: memref<16x32xbf16, #tpu.memory_space<vmem>>, %arg4: memref<1x32xf32, #tpu.memory_space<vmem>>, %arg5: memref<8x32x128xbf16, #tpu.memory_space<vmem>>, %arg6: memref<1x128xf32, #tpu.memory_space<vmem>>, %arg7: memref<4x128xf32, #tpu.memory_space<vmem>>) attributes {dimension_semantics = [], scalar_prefetch = 0 : i64, scratch_operands = 0 : i64, tpu.core_type = #tpu.core_type<tc>} {
    %c0 = arith.constant 0 : index
    %c0_0 = arith.constant 0 : index
    %0 = vector.load %arg0[%c0, %c0_0] : memref<4x16xbf16, #tpu.memory_space<vmem>>, vector<4x16xbf16>
    %c0_1 = arith.constant 0 : index
    %c0_2 = arith.constant 0 : index
    %1 = vector.load %arg3[%c0_1, %c0_2] : memref<16x32xbf16, #tpu.memory_space<vmem>>, vector<16x32xbf16>
    %cst = arith.constant dense<0.000000e+00> : vector<4x32xf32>
    %2 = tpu.matmul %0, %1, %cst {dimension_numbers = #tpu.dot_dimension_numbers<[1], [0], [0], [1], [0, 0, 1, 1], [], []>} : vector<4x16xbf16>, vector<16x32xbf16>, vector<4x32xf32> -> vector<4x32xf32>
    %c0_3 = arith.constant 0 : index
    %c0_4 = arith.constant 0 : index
    %3 = vector.load %arg4[%c0_3, %c0_4] : memref<1x32xf32, #tpu.memory_space<vmem>>, vector<1x32xf32>
    %4 = vector.broadcast %3 : vector<1x32xf32> to vector<4x32xf32>
    %5 = arith.addf %2, %4 : vector<4x32xf32>
    %c0_5 = arith.constant 0 : index
    %c0_6 = arith.constant 0 : index
    %6 = vector.load %arg2[%c0_5, %c0_6] : memref<10x32xbf16, #tpu.memory_space<vmem>>, vector<10x32xbf16>
    %c0_7 = arith.constant 0 : index
    %c0_8 = arith.constant 0 : index
    %7 = vector.load %arg1[%c0_7, %c0_8] : memref<4x8xi32, #tpu.memory_space<vmem>>, vector<4x8xi32>
    %8 = tpu.iota {dimensions = array<i32: 1>} : vector<4x10xi32>
    %cst_9 = arith.constant 0.000000e+00 : f32
    %9 = vector.broadcast %cst_9 : f32 to vector<4x128xf32>
    %10 = vector.extract_strided_slice %7 {offsets = [0, 0], sizes = [4, 1], strides = [1, 1]} : vector<4x8xi32> to vector<4x1xi32>
    %11 = vector.broadcast %10 : vector<4x1xi32> to vector<4x10xi32>
    %12 = arith.cmpi eq, %8, %11 : vector<4x10xi32>
    %13 = arith.extui %12 : vector<4x10xi1> to vector<4x10xi32>
    %14 = arith.sitofp %13 : vector<4x10xi32> to vector<4x10xf32>
    %15 = arith.truncf %14 : vector<4x10xf32> to vector<4x10xbf16>
    %cst_10 = arith.constant dense<0.000000e+00> : vector<4x32xf32>
    %16 = tpu.matmul %15, %6, %cst_10 {dimension_numbers = #tpu.dot_dimension_numbers<[1], [0], [0], [1], [0, 0, 1, 1], [], []>} : vector<4x10xbf16>, vector<10x32xbf16>, vector<4x32xf32> -> vector<4x32xf32>
    %17 = arith.addf %16, %5 : vector<4x32xf32>
    %cst_11 = arith.constant 0.000000e+00 : f32
    %18 = vector.broadcast %cst_11 : f32 to vector<4x32xf32>
    %19 = arith.maximumf %17, %18 : vector<4x32xf32>
    %20 = arith.truncf %19 : vector<4x32xf32> to vector<4x32xbf16>
    %c0_12 = arith.constant 0 : index
    %c0_13 = arith.constant 0 : index
    %c0_14 = arith.constant 0 : index
    %21 = vector.load %arg5[%c0_12, %c0_13, %c0_14] : memref<8x32x128xbf16, #tpu.memory_space<vmem>>, vector<1x32x128xbf16>
    %22 = vector.shape_cast %21 : vector<1x32x128xbf16> to vector<32x128xbf16>
    %cst_15 = arith.constant dense<0.000000e+00> : vector<4x128xf32>
    %23 = tpu.matmul %20, %22, %cst_15 {dimension_numbers = #tpu.dot_dimension_numbers<[1], [0], [0], [1], [0, 0, 1, 1], [], []>} : vector<4x32xbf16>, vector<32x128xbf16>, vector<4x128xf32> -> vector<4x128xf32>
    %24 = arith.addf %9, %23 : vector<4x128xf32>
    %25 = vector.extract_strided_slice %7 {offsets = [0, 1], sizes = [4, 1], strides = [1, 1]} : vector<4x8xi32> to vector<4x1xi32>
    %26 = vector.broadcast %25 : vector<4x1xi32> to vector<4x10xi32>
    %27 = arith.cmpi eq, %8, %26 : vector<4x10xi32>
    %28 = arith.extui %27 : vector<4x10xi1> to vector<4x10xi32>
    %29 = arith.sitofp %28 : vector<4x10xi32> to vector<4x10xf32>
    %30 = arith.truncf %29 : vector<4x10xf32> to vector<4x10xbf16>
    %cst_16 = arith.constant dense<0.000000e+00> : vector<4x32xf32>
    %31 = tpu.matmul %30, %6, %cst_16 {dimension_numbers = #tpu.dot_dimension_numbers<[1], [0], [0], [1], [0, 0, 1, 1], [], []>} : vector<4x10xbf16>, vector<10x32xbf16>, vector<4x32xf32> -> vector<4x32xf32>
    %32 = arith.addf %31, %5 : vector<4x32xf32>
    %cst_17 = arith.constant 0.000000e+00 : f32
    %33 = vector.broadcast %cst_17 : f32 to vector<4x32xf32>
    %34 = arith.maximumf %32, %33 : vector<4x32xf32>
    %35 = arith.truncf %34 : vector<4x32xf32> to vector<4x32xbf16>
    %c1 = arith.constant 1 : index
    %c0_18 = arith.constant 0 : index
    %c0_19 = arith.constant 0 : index
    %36 = vector.load %arg5[%c1, %c0_18, %c0_19] : memref<8x32x128xbf16, #tpu.memory_space<vmem>>, vector<1x32x128xbf16>
    %37 = vector.shape_cast %36 : vector<1x32x128xbf16> to vector<32x128xbf16>
    %cst_20 = arith.constant dense<0.000000e+00> : vector<4x128xf32>
    %38 = tpu.matmul %35, %37, %cst_20 {dimension_numbers = #tpu.dot_dimension_numbers<[1], [0], [0], [1], [0, 0, 1, 1], [], []>} : vector<4x32xbf16>, vector<32x128xbf16>, vector<4x128xf32> -> vector<4x128xf32>
    %39 = arith.addf %24, %38 : vector<4x128xf32>
    %40 = vector.extract_strided_slice %7 {offsets = [0, 2], sizes = [4, 1], strides = [1, 1]} : vector<4x8xi32> to vector<4x1xi32>
    %41 = vector.broadcast %40 : vector<4x1xi32> to vector<4x10xi32>
    %42 = arith.cmpi eq, %8, %41 : vector<4x10xi32>
    %43 = arith.extui %42 : vector<4x10xi1> to vector<4x10xi32>
    %44 = arith.sitofp %43 : vector<4x10xi32> to vector<4x10xf32>
    %45 = arith.truncf %44 : vector<4x10xf32> to vector<4x10xbf16>
    %cst_21 = arith.constant dense<0.000000e+00> : vector<4x32xf32>
    %46 = tpu.matmul %45, %6, %cst_21 {dimension_numbers = #tpu.dot_dimension_numbers<[1], [0], [0], [1], [0, 0, 1, 1], [], []>} : vector<4x10xbf16>, vector<10x32xbf16>, vector<4x32xf32> -> vector<4x32xf32>
    %47 = arith.addf %46, %5 : vector<4x32xf32>
    %cst_22 = arith.constant 0.000000e+00 : f32
    %48 = vector.broadcast %cst_22 : f32 to vector<4x32xf32>
    %49 = arith.maximumf %47, %48 : vector<4x32xf32>
    %50 = arith.truncf %49 : vector<4x32xf32> to vector<4x32xbf16>
    %c2 = arith.constant 2 : index
    %c0_23 = arith.constant 0 : index
    %c0_24 = arith.constant 0 : index
    %51 = vector.load %arg5[%c2, %c0_23, %c0_24] : memref<8x32x128xbf16, #tpu.memory_space<vmem>>, vector<1x32x128xbf16>
    %52 = vector.shape_cast %51 : vector<1x32x128xbf16> to vector<32x128xbf16>
    %cst_25 = arith.constant dense<0.000000e+00> : vector<4x128xf32>
    %53 = tpu.matmul %50, %52, %cst_25 {dimension_numbers = #tpu.dot_dimension_numbers<[1], [0], [0], [1], [0, 0, 1, 1], [], []>} : vector<4x32xbf16>, vector<32x128xbf16>, vector<4x128xf32> -> vector<4x128xf32>
    %54 = arith.addf %39, %53 : vector<4x128xf32>
    %55 = vector.extract_strided_slice %7 {offsets = [0, 3], sizes = [4, 1], strides = [1, 1]} : vector<4x8xi32> to vector<4x1xi32>
    %56 = vector.broadcast %55 : vector<4x1xi32> to vector<4x10xi32>
    %57 = arith.cmpi eq, %8, %56 : vector<4x10xi32>
    %58 = arith.extui %57 : vector<4x10xi1> to vector<4x10xi32>
    %59 = arith.sitofp %58 : vector<4x10xi32> to vector<4x10xf32>
    %60 = arith.truncf %59 : vector<4x10xf32> to vector<4x10xbf16>
    %cst_26 = arith.constant dense<0.000000e+00> : vector<4x32xf32>
    %61 = tpu.matmul %60, %6, %cst_26 {dimension_numbers = #tpu.dot_dimension_numbers<[1], [0], [0], [1], [0, 0, 1, 1], [], []>} : vector<4x10xbf16>, vector<10x32xbf16>, vector<4x32xf32> -> vector<4x32xf32>
    %62 = arith.addf %61, %5 : vector<4x32xf32>
    %cst_27 = arith.constant 0.000000e+00 : f32
    %63 = vector.broadcast %cst_27 : f32 to vector<4x32xf32>
    %64 = arith.maximumf %62, %63 : vector<4x32xf32>
    %65 = arith.truncf %64 : vector<4x32xf32> to vector<4x32xbf16>
    %c3 = arith.constant 3 : index
    %c0_28 = arith.constant 0 : index
    %c0_29 = arith.constant 0 : index
    %66 = vector.load %arg5[%c3, %c0_28, %c0_29] : memref<8x32x128xbf16, #tpu.memory_space<vmem>>, vector<1x32x128xbf16>
    %67 = vector.shape_cast %66 : vector<1x32x128xbf16> to vector<32x128xbf16>
    %cst_30 = arith.constant dense<0.000000e+00> : vector<4x128xf32>
    %68 = tpu.matmul %65, %67, %cst_30 {dimension_numbers = #tpu.dot_dimension_numbers<[1], [0], [0], [1], [0, 0, 1, 1], [], []>} : vector<4x32xbf16>, vector<32x128xbf16>, vector<4x128xf32> -> vector<4x128xf32>
    %69 = arith.addf %54, %68 : vector<4x128xf32>
    %70 = vector.extract_strided_slice %7 {offsets = [0, 4], sizes = [4, 1], strides = [1, 1]} : vector<4x8xi32> to vector<4x1xi32>
    %71 = vector.broadcast %70 : vector<4x1xi32> to vector<4x10xi32>
    %72 = arith.cmpi eq, %8, %71 : vector<4x10xi32>
    %73 = arith.extui %72 : vector<4x10xi1> to vector<4x10xi32>
    %74 = arith.sitofp %73 : vector<4x10xi32> to vector<4x10xf32>
    %75 = arith.truncf %74 : vector<4x10xf32> to vector<4x10xbf16>
    %cst_31 = arith.constant dense<0.000000e+00> : vector<4x32xf32>
    %76 = tpu.matmul %75, %6, %cst_31 {dimension_numbers = #tpu.dot_dimension_numbers<[1], [0], [0], [1], [0, 0, 1, 1], [], []>} : vector<4x10xbf16>, vector<10x32xbf16>, vector<4x32xf32> -> vector<4x32xf32>
    %77 = arith.addf %76, %5 : vector<4x32xf32>
    %cst_32 = arith.constant 0.000000e+00 : f32
    %78 = vector.broadcast %cst_32 : f32 to vector<4x32xf32>
    %79 = arith.maximumf %77, %78 : vector<4x32xf32>
    %80 = arith.truncf %79 : vector<4x32xf32> to vector<4x32xbf16>
    %c4 = arith.constant 4 : index
    %c0_33 = arith.constant 0 : index
    %c0_34 = arith.constant 0 : index
    %81 = vector.load %arg5[%c4, %c0_33, %c0_34] : memref<8x32x128xbf16, #tpu.memory_space<vmem>>, vector<1x32x128xbf16>
    %82 = vector.shape_cast %81 : vector<1x32x128xbf16> to vector<32x128xbf16>
    %cst_35 = arith.constant dense<0.000000e+00> : vector<4x128xf32>
    %83 = tpu.matmul %80, %82, %cst_35 {dimension_numbers = #tpu.dot_dimension_numbers<[1], [0], [0], [1], [0, 0, 1, 1], [], []>} : vector<4x32xbf16>, vector<32x128xbf16>, vector<4x128xf32> -> vector<4x128xf32>
    %84 = arith.addf %69, %83 : vector<4x128xf32>
    %85 = vector.extract_strided_slice %7 {offsets = [0, 5], sizes = [4, 1], strides = [1, 1]} : vector<4x8xi32> to vector<4x1xi32>
    %86 = vector.broadcast %85 : vector<4x1xi32> to vector<4x10xi32>
    %87 = arith.cmpi eq, %8, %86 : vector<4x10xi32>
    %88 = arith.extui %87 : vector<4x10xi1> to vector<4x10xi32>
    %89 = arith.sitofp %88 : vector<4x10xi32> to vector<4x10xf32>
    %90 = arith.truncf %89 : vector<4x10xf32> to vector<4x10xbf16>
    %cst_36 = arith.constant dense<0.000000e+00> : vector<4x32xf32>
    %91 = tpu.matmul %90, %6, %cst_36 {dimension_numbers = #tpu.dot_dimension_numbers<[1], [0], [0], [1], [0, 0, 1, 1], [], []>} : vector<4x10xbf16>, vector<10x32xbf16>, vector<4x32xf32> -> vector<4x32xf32>
    %92 = arith.addf %91, %5 : vector<4x32xf32>
    %cst_37 = arith.constant 0.000000e+00 : f32
    %93 = vector.broadcast %cst_37 : f32 to vector<4x32xf32>
    %94 = arith.maximumf %92, %93 : vector<4x32xf32>
    %95 = arith.truncf %94 : vector<4x32xf32> to vector<4x32xbf16>
    %c5 = arith.constant 5 : index
    %c0_38 = arith.constant 0 : index
    %c0_39 = arith.constant 0 : index
    %96 = vector.load %arg5[%c5, %c0_38, %c0_39] : memref<8x32x128xbf16, #tpu.memory_space<vmem>>, vector<1x32x128xbf16>
    %97 = vector.shape_cast %96 : vector<1x32x128xbf16> to vector<32x128xbf16>
    %cst_40 = arith.constant dense<0.000000e+00> : vector<4x128xf32>
    %98 = tpu.matmul %95, %97, %cst_40 {dimension_numbers = #tpu.dot_dimension_numbers<[1], [0], [0], [1], [0, 0, 1, 1], [], []>} : vector<4x32xbf16>, vector<32x128xbf16>, vector<4x128xf32> -> vector<4x128xf32>
    %99 = arith.addf %84, %98 : vector<4x128xf32>
    %100 = vector.extract_strided_slice %7 {offsets = [0, 6], sizes = [4, 1], strides = [1, 1]} : vector<4x8xi32> to vector<4x1xi32>
    %101 = vector.broadcast %100 : vector<4x1xi32> to vector<4x10xi32>
    %102 = arith.cmpi eq, %8, %101 : vector<4x10xi32>
    %103 = arith.extui %102 : vector<4x10xi1> to vector<4x10xi32>
    %104 = arith.sitofp %103 : vector<4x10xi32> to vector<4x10xf32>
    %105 = arith.truncf %104 : vector<4x10xf32> to vector<4x10xbf16>
    %cst_41 = arith.constant dense<0.000000e+00> : vector<4x32xf32>
    %106 = tpu.matmul %105, %6, %cst_41 {dimension_numbers = #tpu.dot_dimension_numbers<[1], [0], [0], [1], [0, 0, 1, 1], [], []>} : vector<4x10xbf16>, vector<10x32xbf16>, vector<4x32xf32> -> vector<4x32xf32>
    %107 = arith.addf %106, %5 : vector<4x32xf32>
    %cst_42 = arith.constant 0.000000e+00 : f32
    %108 = vector.broadcast %cst_42 : f32 to vector<4x32xf32>
    %109 = arith.maximumf %107, %108 : vector<4x32xf32>
    %110 = arith.truncf %109 : vector<4x32xf32> to vector<4x32xbf16>
    %c6 = arith.constant 6 : index
    %c0_43 = arith.constant 0 : index
    %c0_44 = arith.constant 0 : index
    %111 = vector.load %arg5[%c6, %c0_43, %c0_44] : memref<8x32x128xbf16, #tpu.memory_space<vmem>>, vector<1x32x128xbf16>
    %112 = vector.shape_cast %111 : vector<1x32x128xbf16> to vector<32x128xbf16>
    %cst_45 = arith.constant dense<0.000000e+00> : vector<4x128xf32>
    %113 = tpu.matmul %110, %112, %cst_45 {dimension_numbers = #tpu.dot_dimension_numbers<[1], [0], [0], [1], [0, 0, 1, 1], [], []>} : vector<4x32xbf16>, vector<32x128xbf16>, vector<4x128xf32> -> vector<4x128xf32>
    %114 = arith.addf %99, %113 : vector<4x128xf32>
    %115 = vector.extract_strided_slice %7 {offsets = [0, 7], sizes = [4, 1], strides = [1, 1]} : vector<4x8xi32> to vector<4x1xi32>
    %116 = vector.broadcast %115 : vector<4x1xi32> to vector<4x10xi32>
    %117 = arith.cmpi eq, %8, %116 : vector<4x10xi32>
    %118 = arith.extui %117 : vector<4x10xi1> to vector<4x10xi32>
    %119 = arith.sitofp %118 : vector<4x10xi32> to vector<4x10xf32>
    %120 = arith.truncf %119 : vector<4x10xf32> to vector<4x10xbf16>
    %cst_46 = arith.constant dense<0.000000e+00> : vector<4x32xf32>
    %121 = tpu.matmul %120, %6, %cst_46 {dimension_numbers = #tpu.dot_dimension_numbers<[1], [0], [0], [1], [0, 0, 1, 1], [], []>} : vector<4x10xbf16>, vector<10x32xbf16>, vector<4x32xf32> -> vector<4x32xf32>
    %122 = arith.addf %121, %5 : vector<4x32xf32>
    %cst_47 = arith.constant 0.000000e+00 : f32
    %123 = vector.broadcast %cst_47 : f32 to vector<4x32xf32>
    %124 = arith.maximumf %122, %123 : vector<4x32xf32>
    %125 = arith.truncf %124 : vector<4x32xf32> to vector<4x32xbf16>
    %c7 = arith.constant 7 : index
    %c0_48 = arith.constant 0 : index
    %c0_49 = arith.constant 0 : index
    %126 = vector.load %arg5[%c7, %c0_48, %c0_49] : memref<8x32x128xbf16, #tpu.memory_space<vmem>>, vector<1x32x128xbf16>
    %127 = vector.shape_cast %126 : vector<1x32x128xbf16> to vector<32x128xbf16>
    %cst_50 = arith.constant dense<0.000000e+00> : vector<4x128xf32>
    %128 = tpu.matmul %125, %127, %cst_50 {dimension_numbers = #tpu.dot_dimension_numbers<[1], [0], [0], [1], [0, 0, 1, 1], [], []>} : vector<4x32xbf16>, vector<32x128xbf16>, vector<4x128xf32> -> vector<4x128xf32>
    %129 = arith.addf %114, %128 : vector<4x128xf32>
    %c0_51 = arith.constant 0 : index
    %c0_52 = arith.constant 0 : index
    %130 = vector.load %arg6[%c0_51, %c0_52] : memref<1x128xf32, #tpu.memory_space<vmem>>, vector<1x128xf32>
    %131 = vector.broadcast %130 : vector<1x128xf32> to vector<4x128xf32>
    %132 = arith.addf %129, %131 : vector<4x128xf32>
    %cst_53 = arith.constant dense<0xFF800000> : vector<4xf32>
    %133 = vector.multi_reduction <maximumf>, %132, %cst_53 [1] : vector<4x128xf32> to vector<4xf32>
    %134 = vector.shape_cast %133 : vector<4xf32> to vector<4x1xf32>
    %135 = vector.broadcast %134 : vector<4x1xf32> to vector<4x128xf32>
    %136 = arith.subf %132, %135 : vector<4x128xf32>
    %137 = math.exp %136 : vector<4x128xf32>
    %cst_54 = arith.constant dense<0.000000e+00> : vector<4xf32>
    %138 = vector.multi_reduction <add>, %137, %cst_54 [1] : vector<4x128xf32> to vector<4xf32>
    %139 = vector.shape_cast %138 : vector<4xf32> to vector<4x1xf32>
    %140 = tpu.reciprocal %139 {approx = true} : vector<4x1xf32> -> vector<4x1xf32>
    %141 = vector.broadcast %140 : vector<4x1xf32> to vector<4x128xf32>
    %142 = arith.mulf %137, %141 : vector<4x128xf32>
    %c0_55 = arith.constant 0 : index
    %c0_56 = arith.constant 0 : index
    %143 = vector.load %arg7[%c0_55, %c0_56] : memref<4x128xf32, #tpu.memory_space<vmem>>, vector<4x128xf32>
    tpu.vector_store %arg7[%c0_55, %c0_56], %142 {strides = array<i32>} : memref<4x128xf32, #tpu.memory_space<vmem>>, vector<4x128xf32>,
    return
  }
}

</mosaic_0001>

<llo_original>
// kernel: mlp_forward.1
$region0: #{mlp_forward.1}
  #allocation0 [shape = 'u32[]', space=smem, size = 0x4, offset = 0x4, fixed_abs, tag = 'smem constant byte address 0x4 - core index']
  #allocation1 [shape = 'u32[144,128]{1,0:T(1,128)}', space=vmem, size = 0x12000, scoped, tag = 'internal scratch']
  %s0 = inlined_call_operand.vmem [shape: bf16[4,16], index: 0, kind: input, shape index: {}]
  %s1 = inlined_call_operand.hbm [shape: s32[4,8], index: 1, kind: input, shape index: {}]
  %s2 = inlined_call_operand.vmem [shape: bf16[10,32], index: 2, kind: input, shape index: {}]
  %s3 = inlined_call_operand.vmem [shape: bf16[16,32], index: 3, kind: input, shape index: {}]
  %s4 = inlined_call_operand.vmem [shape: f32[1,32], index: 4, kind: input, shape index: {}]
  %s5 = inlined_call_operand.hbm [shape: bf16[8,32,128], index: 5, kind: input, shape index: {}]
  %s6 = inlined_call_operand.vmem [shape: f32[1,128], index: 6, kind: input, shape index: {}]
  %s7 = inlined_call_operand.hbm [shape: f32[4,128], index: 7, kind: output, shape index: {}]
  %s8 = sld [smem:[#allocation0]]
  $region46: #{mlp_forward.1} parent=0
    _
  %s10 = ssub.s32 1, %s8
  %s11 = scalar_select 0, %s10, %s8
  $region1: #{mlp_forward.1} parent=0
    #allocation2 [shape = 'u8[2048]{0}', space=vmem, size = 0x800, scoped, tag = 'input window, operand 1, single buffered']
    #allocation3 [shape = 's32[1]{0}', space=sflag, size = 0x4, scoped, tag = 'scoped memory for mlp_forward.1']
    #allocation4 [shape = 's32[1]{0}', space=sflag, size = 0x4, scoped, tag = 'scoped memory for mlp_forward.1']
    #allocation5 [shape = 'u8[65536]{0}', space=vmem, size = 0x10000, scoped, tag = 'input window, operand 5, single buffered']
    #allocation6 [shape = 's32[1]{0}', space=sflag, size = 0x4, scoped, tag = 'scoped memory for mlp_forward.1']
    #allocation7 [shape = 'u8[2048]{0}', space=vmem, size = 0x800, scoped, tag = 'output window, operand 0, single buffered']
    %12 = vsyncpa [#allocation3], 0
    %13 = vsyncpa [#allocation6], 0
    %14 = vsyncpa [#allocation4], 0
    // Predicated region
    $region2: #{mlp_forward.1} parent=1 // pred_check
      _
    $region3: #{mlp_forward.1} parent=1 // pred_check_branch
      %16 = sbr.rel (0) target = $region5
    $region4: #{mlp_forward.1} parent=1 // pred_region
      _
    $region5: #{mlp_forward.1} parent=1 // pred_fallthru
      _
    // Predicated region
    $region6: #{mlp_forward.1} parent=1 // pred_check
      _
    $region7: #{mlp_forward.1} parent=1 // pred_check_branch
      %18 = sbr.rel (0) target = $region9
    $region8: #{mlp_forward.1} parent=1 // pred_region
      %s20 = ssub.s32 64, 64
      %21 = vsyncadd [#allocation3], %s20
      %s23 = sshll.u32 [#allocation2], 4
      %s24 = int_to_ptr.vmem [resolvable:$true] %s23
      %26 = dma.hbm_to_vmem [thread:$0]  %s1, 64, %s24, [#allocation3]
    $region9: #{mlp_forward.1} parent=1 // pred_fallthru
      _
    // Predicated region
    $region10: #{mlp_forward.1} parent=1 // pred_check
      _
    $region11: #{mlp_forward.1} parent=1 // pred_check_branch
      %28 = sbr.rel (0) target = $region13
    $region12: #{mlp_forward.1} parent=1 // pred_region
      _
    $region13: #{mlp_forward.1} parent=1 // pred_fallthru
      _
    // Predicated region
    $region14: #{mlp_forward.1} parent=1 // pred_check
      _
    $region15: #{mlp_forward.1} parent=1 // pred_check_branch
      %30 = sbr.rel (0) target = $region17
    $region16: #{mlp_forward.1} parent=1 // pred_region
      _
    $region17: #{mlp_forward.1} parent=1 // pred_fallthru
      _
    // Predicated region
    $region18: #{mlp_forward.1} parent=1 // pred_check
      _
    $region19: #{mlp_forward.1} parent=1 // pred_check_branch
      %32 = sbr.rel (0) target = $region21
    $region20: #{mlp_forward.1} parent=1 // pred_region
      _
    $region21: #{mlp_forward.1} parent=1 // pred_fallthru
      _
    // Predicated region
    $region22: #{mlp_forward.1} parent=1 // pred_check
      _
    $region23: #{mlp_forward.1} parent=1 // pred_check_branch
      %34 = sbr.rel (0) target = $region25
    $region24: #{mlp_forward.1} parent=1 // pred_region
      %s36 = ssub.s32 2048, 2048
      %37 = vsyncadd [#allocation6], %s36
      %s38 = sshll.u32 [#allocation5], 4
      %s39 = int_to_ptr.vmem [resolvable:$true] %s38
      %44 = dma.hbm_to_vmem [thread:$0]  %s5, 2048, %s39, [#allocation6], 64, 64, 4
    $region25: #{mlp_forward.1} parent=1 // pred_fallthru
      _
    // Predicated region
    $region26: #{mlp_forward.1} parent=1 // pred_check
      _
    $region27: #{mlp_forward.1} parent=1 // pred_check_branch
      %46 = sbr.rel (0) target = $region29
    $region28: #{mlp_forward.1} parent=1 // pred_region
      _
    $region29: #{mlp_forward.1} parent=1 // pred_fallthru
      _
    // Predicated region
    $region30: #{mlp_forward.1} parent=1 // pred_check
      _
    $region31: #{mlp_forward.1} parent=1 // pred_check_branch
      %48 = sbr.rel (0) target = $region33
    $region32: #{mlp_forward.1} parent=1 // pred_region
      %49 = dma.done [#allocation3], 64
    $region33: #{mlp_forward.1} parent=1 // pred_fallthru
      _
    // Predicated region
    $region34: #{mlp_forward.1} parent=1 // pred_check
      _
    $region35: #{mlp_forward.1} parent=1 // pred_check_branch
      %51 = sbr.rel (0) target = $region37
    $region36: #{mlp_forward.1} parent=1 // pred_region
      %52 = dma.done [#allocation6], 2048
    $region37: #{mlp_forward.1} parent=1 // pred_fallthru
      _
    %v54 = vld [vmem:[%s0] sm:$0x3]
    %v55 = vld [vmem:[%s3] sm:$0xf]
    %v56 = vld [vmem:[%s3 + $0x4] sm:$0xf]
    %v57 = vld [vmem:[%s4] sm:$0x1]
    %v59 = vlaneseq
    %v60 = vshrl.u32 %v59, 7
    %v61 = vsub.s32 0, %v60
    %v62 = vrot.slane %v57, %v61
    %v66 = vunpack.c.l.b16 %v55
    %v67 = vunpack.c.l.b16 %v56
    %v68 = vpack.c.b16 %v67, %v66
    %vm70 = vcmask 130048
    %v72 = vsel %vm70, %v54, 0
    %74 = vmatprep.subr.bf16.mxu0 0
    %75 = vmatpush1.bf16.msra.mxu0 %v68
    %76 = vmatprep.subr.bf16.mxu0 0
    %77 = vmatpush1.bf16.msra.mxu0 0
    %78 = vmatprep.subr.bf16.mxu0 0
    %79 = vmatpush1.bf16.msra.mxu0 0
    %80 = vmatprep.subr.bf16.mxu0 0
    %81 = vmatpush1.bf16.msra.mxu0 0
    %82 = vmatprep.subr.bf16.mxu0 0
    %83 = vmatpush1.bf16.msra.mxu0 0
    %84 = vmatprep.subr.bf16.mxu0 0
    %85 = vmatpush1.bf16.msra.mxu0 0
    %86 = vmatprep.subr.bf16.mxu0 0
    %87 = vmatpush1.bf16.msra.mxu0 0
    %88 = vmatprep.subr.bf16.mxu0 0
    %89 = vmatpush1.bf16.msra.mxu0 0
    %90 = vmatprep.subr.bf16.mxu0 0
    %91 = vmatpush1.bf16.msra.mxu0 0
    %92 = vmatprep.subr.bf16.mxu0 0
    %93 = vmatpush1.bf16.msra.mxu0 0
    %94 = vmatprep.subr.bf16.mxu0 0
    %95 = vmatpush1.bf16.msra.mxu0 0
    %96 = vmatprep.subr.bf16.mxu0 0
    %97 = vmatpush1.bf16.msra.mxu0 0
    %98 = vmatprep.subr.bf16.mxu0 0
    %99 = vmatpush1.bf16.msra.mxu0 0
    %100 = vmatprep.subr.bf16.mxu0 0
    %101 = vmatpush1.bf16.msra.mxu0 0
    %102 = vmatprep.subr.bf16.mxu0 0
    %103 = vmatpush1.bf16.msra.mxu0 0
    %104 = vmatprep.subr.bf16.mxu0 0
    %105 = vmatpush1.bf16.msra.mxu0 0
    %106 = vmatprep.mubr.bf16.mxu0 0
    %107 = vmatmul.mubr.bf16.gmra.mrb[0].mxu0 %v72
    %v108 = vpop.f32.mrb[0].mxu0
    %v109 = vadd.f32 %v62, %v108
    %v110 = vpop.f32.mrb[0].mxu0
    %v111 = vpop.f32.mrb[0].mxu0
    %v112 = vpop.f32.mrb[0].mxu0
    %113 = vdwg.mxu0
    %v114 = vld [vmem:[%s2] sm:$0xf]
    %v115 = vld [vmem:[%s2 + $0x4] sm:$0x1]
    %v116 = vld [vmem:[#allocation2] sm:$0xf]
    %v117 = vlaneseq
    %v118 = vand.u32 %v117, 127
    %119 = vset.pattern.permute.xlu0 0
    %120 = vperm.xlu0 %119, %v116
    %v121 = vpop.permute.xlu0 %120
    %vm122 = vcmp.eq.s32.totalorder %v118, %v121
    %v123 = vsel %vm122, 1, 0
    %v124 = vcvt.s32.f32 %v123
    %v125 = vpack.c.bf16 %v124, %v124
    %v128 = vunpack.c.l.b16 %v114
    %v129 = vunpack.c.l.b16 %v115
    %v130 = vpack.c.b16 %v129, %v128
    %vm131 = vcmask 80896
    %v133 = vsel %vm131, %v125, 0
    %vm135 = vcmask 1044480
    %v137 = vsel %vm135, %v130, 0
    %139 = vmatprep.subr.bf16.mxu0 0
    %140 = vmatpush1.bf16.msra.mxu0 %v137
    %141 = vmatprep.subr.bf16.mxu0 0
    %142 = vmatpush1.bf16.msra.mxu0 0
    %143 = vmatprep.subr.bf16.mxu0 0
    %144 = vmatpush1.bf16.msra.mxu0 0
    %145 = vmatprep.subr.bf16.mxu0 0
    %146 = vmatpush1.bf16.msra.mxu0 0
    %147 = vmatprep.subr.bf16.mxu0 0
    %148 = vmatpush1.bf16.msra.mxu0 0
    %149 = vmatprep.subr.bf16.mxu0 0
    %150 = vmatpush1.bf16.msra.mxu0 0
    %151 = vmatprep.subr.bf16.mxu0 0
    %152 = vmatpush1.bf16.msra.mxu0 0
    %153 = vmatprep.subr.bf16.mxu0 0
    %154 = vmatpush1.bf16.msra.mxu0 0
    %155 = vmatprep.subr.bf16.mxu0 0
    %156 = vmatpush1.bf16.msra.mxu0 0
    %157 = vmatprep.subr.bf16.mxu0 0
    %158 = vmatpush1.bf16.msra.mxu0 0
    %159 = vmatprep.subr.bf16.mxu0 0
    %160 = vmatpush1.bf16.msra.mxu0 0
    %161 = vmatprep.subr.bf16.mxu0 0
    %162 = vmatpush1.bf16.msra.mxu0 0
    %163 = vmatprep.subr.bf16.mxu0 0
    %164 = vmatpush1.bf16.msra.mxu0 0
    %165 = vmatprep.subr.bf16.mxu0 0
    %166 = vmatpush1.bf16.msra.mxu0 0
    %167 = vmatprep.subr.bf16.mxu0 0
    %168 = vmatpush1.bf16.msra.mxu0 0
    %169 = vmatprep.subr.bf16.mxu0 0
    %170 = vmatpush1.bf16.msra.mxu0 0
    %171 = vmatprep.mubr.bf16.mxu0 0
    %172 = vmatmul.mubr.bf16.gmra.mrb[0].mxu0 %v133
    %v173 = vpop.f32.mrb[0].mxu0
    %v174 = vadd.f32 %v109, %v173
    %v175 = vpop.f32.mrb[0].mxu0
    %v176 = vpop.f32.mrb[0].mxu0
    %v177 = vpop.f32.mrb[0].mxu0
    %178 = vdwg.mxu0
    %v179 = vmax.f32 %v174, 0.0
    %v180 = vpack.c.bf16 %v179, %v179
    %v181 = vld [vmem:[#allocation5] sm:$0xf]
    %v182 = vld [vmem:[#allocation5 + $0x4] sm:$0xf]
    %v183 = vld [vmem:[#allocation5 + $0x8] sm:$0xf]
    %v184 = vld [vmem:[#allocation5 + $0xc] sm:$0xf]
    %185 = vset.pattern.permute.xlu0 1
    %186 = vperm.xlu0 %185, %v116
    %v187 = vpop.permute.xlu0 %186
    %vm188 = vcmp.eq.s32.totalorder %v118, %v187
    %v189 = vsel %vm188, 1, 0
    %v190 = vcvt.s32.f32 %v189
    %v191 = vpack.c.bf16 %v190, %v190
    %v193 = vsel %vm131, %v191, 0
    %195 = vmatprep.subr.bf16.mxu0 0
    %196 = vmatpush1.bf16.msra.mxu0 %v137
    %197 = vmatprep.subr.bf16.mxu0 0
    %198 = vmatpush1.bf16.msra.mxu0 0
    %199 = vmatprep.subr.bf16.mxu0 0
    %200 = vmatpush1.bf16.msra.mxu0 0
    %201 = vmatprep.subr.bf16.mxu0 0
    %202 = vmatpush1.bf16.msra.mxu0 0
    %203 = vmatprep.subr.bf16.mxu0 0
    %204 = vmatpush1.bf16.msra.mxu0 0
    %205 = vmatprep.subr.bf16.mxu0 0
    %206 = vmatpush1.bf16.msra.mxu0 0
    %207 = vmatprep.subr.bf16.mxu0 0
    %208 = vmatpush1.bf16.msra.mxu0 0
    %209 = vmatprep.subr.bf16.mxu0 0
    %210 = vmatpush1.bf16.msra.mxu0 0
    %211 = vmatprep.subr.bf16.mxu0 0
    %212 = vmatpush1.bf16.msra.mxu0 0
    %213 = vmatprep.subr.bf16.mxu0 0
    %214 = vmatpush1.bf16.msra.mxu0 0
    %215 = vmatprep.subr.bf16.mxu0 0
    %216 = vmatpush1.bf16.msra.mxu0 0
    %217 = vmatprep.subr.bf16.mxu0 0
    %218 = vmatpush1.bf16.msra.mxu0 0
    %219 = vmatprep.subr.bf16.mxu0 0
    %220 = vmatpush1.bf16.msra.mxu0 0
    %221 = vmatprep.subr.bf16.mxu0 0
    %222 = vmatpush1.bf16.msra.mxu0 0
    %223 = vmatprep.subr.bf16.mxu0 0
    %224 = vmatpush1.bf16.msra.mxu0 0
    %225 = vmatprep.subr.bf16.mxu0 0
    %226 = vmatpush1.bf16.msra.mxu0 0
    %227 = vmatprep.mubr.bf16.mxu0 0
    %228 = vmatmul.mubr.bf16.gmra.mrb[0].mxu0 %v193
    %v229 = vpop.f32.mrb[0].mxu0
    %v230 = vadd.f32 %v109, %v229
    %v231 = vpop.f32.mrb[0].mxu0
    %v232 = vpop.f32.mrb[0].mxu0
    %v233 = vpop.f32.mrb[0].mxu0
    %234 = vdwg.mxu0
    %v235 = vmax.f32 %v230, 0.0
    %v236 = vpack.c.bf16 %v235, %v235
    %s237 = scalar_lea.vmem [#allocation5], 16
    %v238 = vld [vmem:[%s237] sm:$0xf]
    %v239 = vld [vmem:[%s237 + $0x4] sm:$0xf]
    %v240 = vld [vmem:[%s237 + $0x8] sm:$0xf]
    %v241 = vld [vmem:[%s237 + $0xc] sm:$0xf]
    %v246 = vunpack.c.l.b16 %v238
    %v247 = vunpack.c.l.b16 %v239
    %v248 = vunpack.c.l.b16 %v240
    %v249 = vunpack.c.l.b16 %v241
    %v250 = vpack.c.b16 %v247, %v246
    %v251 = vpack.c.b16 %v249, %v248
    %vm254 = vcmask 261120
    %v256 = vsel %vm254, %v236, 0
    %258 = vmatprep.subr.bf16.mxu0 0
    %259 = vmatpush1.bf16.msra.mxu0 %v250
    %260 = vmatprep.subr.bf16.mxu0 0
    %261 = vmatpush1.bf16.msra.mxu0 %v251
    %262 = vmatprep.subr.bf16.mxu0 0
    %263 = vmatpush1.bf16.msra.mxu0 0
    %264 = vmatprep.subr.bf16.mxu0 0
    %265 = vmatpush1.bf16.msra.mxu0 0
    %266 = vmatprep.subr.bf16.mxu0 0
    %267 = vmatpush1.bf16.msra.mxu0 0
    %268 = vmatprep.subr.bf16.mxu0 0
    %269 = vmatpush1.bf16.msra.mxu0 0
    %270 = vmatprep.subr.bf16.mxu0 0
    %271 = vmatpush1.bf16.msra.mxu0 0
    %272 = vmatprep.subr.bf16.mxu0 0
    %273 = vmatpush1.bf16.msra.mxu0 0
    %274 = vmatprep.subr.bf16.mxu0 0
    %275 = vmatpush1.bf16.msra.mxu0 0
    %276 = vmatprep.subr.bf16.mxu0 0
    %277 = vmatpush1.bf16.msra.mxu0 0
    %278 = vmatprep.subr.bf16.mxu0 0
    %279 = vmatpush1.bf16.msra.mxu0 0
    %280 = vmatprep.subr.bf16.mxu0 0
    %281 = vmatpush1.bf16.msra.mxu0 0
    %282 = vmatprep.subr.bf16.mxu0 0
    %283 = vmatpush1.bf16.msra.mxu0 0
    %284 = vmatprep.subr.bf16.mxu0 0
    %285 = vmatpush1.bf16.msra.mxu0 0
    %286 = vmatprep.subr.bf16.mxu0 0
    %287 = vmatpush1.bf16.msra.mxu0 0
    %288 = vmatprep.subr.bf16.mxu0 0
    %289 = vmatpush1.bf16.msra.mxu0 0
    %290 = vmatprep.mubr.bf16.mxu0 0
    %291 = vmatmul.mubr.bf16.gmra.mrb[0].mxu0 %v256
    %v292 = vpop.f32.mrb[0].mxu0
    %v293 = vadd.f32 0.0, %v292
    %v294 = vpop.f32.mrb[0].mxu0
    %v295 = vpop.f32.mrb[0].mxu0
    %v296 = vpop.f32.mrb[0].mxu0
    %297 = vdwg.mxu0
    %v302 = vunpack.c.l.b16 %v181
    %v303 = vunpack.c.l.b16 %v182
    %v304 = vunpack.c.l.b16 %v183
    %v305 = vunpack.c.l.b16 %v184
    %v306 = vpack.c.b16 %v303, %v302
    %v307 = vpack.c.b16 %v305, %v304
    %v311 = vsel %vm254, %v180, 0
    %313 = vmatprep.subr.bf16.mxu0 0
    %314 = vmatpush1.bf16.msra.mxu0 %v306
    %315 = vmatprep.subr.bf16.mxu0 0
    %316 = vmatpush1.bf16.msra.mxu0 %v307
    %317 = vmatprep.subr.bf16.mxu0 0
    %318 = vmatpush1.bf16.msra.mxu0 0
    %319 = vmatprep.subr.bf16.mxu0 0
    %320 = vmatpush1.bf16.msra.mxu0 0
    %321 = vmatprep.subr.bf16.mxu0 0
    %322 = vmatpush1.bf16.msra.mxu0 0
    %323 = vmatprep.subr.bf16.mxu0 0
    %324 = vmatpush1.bf16.msra.mxu0 0
    %325 = vmatprep.subr.bf16.mxu0 0
    %326 = vmatpush1.bf16.msra.mxu0 0
    %327 = vmatprep.subr.bf16.mxu0 0
    %328 = vmatpush1.bf16.msra.mxu0 0
    %329 = vmatprep.subr.bf16.mxu0 0
    %330 = vmatpush1.bf16.msra.mxu0 0
    %331 = vmatprep.subr.bf16.mxu0 0
    %332 = vmatpush1.bf16.msra.mxu0 0
    %333 = vmatprep.subr.bf16.mxu0 0
    %334 = vmatpush1.bf16.msra.mxu0 0
    %335 = vmatprep.subr.bf16.mxu0 0
    %336 = vmatpush1.bf16.msra.mxu0 0
    %337 = vmatprep.subr.bf16.mxu0 0
    %338 = vmatpush1.bf16.msra.mxu0 0
    %339 = vmatprep.subr.bf16.mxu0 0
    %340 = vmatpush1.bf16.msra.mxu0 0
    %341 = vmatprep.subr.bf16.mxu0 0
    %342 = vmatpush1.bf16.msra.mxu0 0
    %343 = vmatprep.subr.bf16.mxu0 0
    %344 = vmatpush1.bf16.msra.mxu0 0
    %345 = vmatprep.mubr.bf16.mxu0 0
    %346 = vmatmul.mubr.bf16.gmra.mrb[0].mxu0 %v311
    %v347 = vpop.f32.mrb[0].mxu0
    %v348 = vadd.f32 %v293, %v347
    %v349 = vpop.f32.mrb[0].mxu0
    %v350 = vpop.f32.mrb[0].mxu0
    %v351 = vpop.f32.mrb[0].mxu0
    %352 = vdwg.mxu0
    %353 = vset.pattern.permute.xlu0 2
    %354 = vperm.xlu0 %353, %v116
    %v355 = vpop.permute.xlu0 %354
    %vm356 = vcmp.eq.s32.totalorder %v118, %v355
    %v357 = vsel %vm356, 1, 0
    %v358 = vcvt.s32.f32 %v357
    %v359 = vpack.c.bf16 %v358, %v358
    %v361 = vsel %vm131, %v359, 0
    %363 = vmatprep.subr.bf16.mxu0 0
    %364 = vmatpush1.bf16.msra.mxu0 %v137
    %365 = vmatprep.subr.bf16.mxu0 0
    %366 = vmatpush1.bf16.msra.mxu0 0
    %367 = vmatprep.subr.bf16.mxu0 0
    %368 = vmatpush1.bf16.msra.mxu0 0
    %369 = vmatprep.subr.bf16.mxu0 0
    %370 = vmatpush1.bf16.msra.mxu0 0
    %371 = vmatprep.subr.bf16.mxu0 0
    %372 = vmatpush1.bf16.msra.mxu0 0
    %373 = vmatprep.subr.bf16.mxu0 0
    %374 = vmatpush1.bf16.msra.mxu0 0
    %375 = vmatprep.subr.bf16.mxu0 0
    %376 = vmatpush1.bf16.msra.mxu0 0
    %377 = vmatprep.subr.bf16.mxu0 0
    %378 = vmatpush1.bf16.msra.mxu0 0
    %379 = vmatprep.subr.bf16.mxu0 0
    %380 = vmatpush1.bf16.msra.mxu0 0
    %381 = vmatprep.subr.bf16.mxu0 0
    %382 = vmatpush1.bf16.msra.mxu0 0
    %383 = vmatprep.subr.bf16.mxu0 0
    %384 = vmatpush1.bf16.msra.mxu0 0
    %385 = vmatprep.subr.bf16.mxu0 0
    %386 = vmatpush1.bf16.msra.mxu0 0
    %387 = vmatprep.subr.bf16.mxu0 0
    %388 = vmatpush1.bf16.msra.mxu0 0
    %389 = vmatprep.subr.bf16.mxu0 0
    %390 = vmatpush1.bf16.msra.mxu0 0
    %391 = vmatprep.subr.bf16.mxu0 0
    %392 = vmatpush1.bf16.msra.mxu0 0
    %393 = vmatprep.subr.bf16.mxu0 0
    %394 = vmatpush1.bf16.msra.mxu0 0
    %395 = vmatprep.mubr.bf16.mxu0 0
    %396 = vmatmul.mubr.bf16.gmra.mrb[0].mxu0 %v361
    %v397 = vpop.f32.mrb[0].mxu0
    %v398 = vadd.f32 %v109, %v397
    %v399 = vpop.f32.mrb[0].mxu0
    %v400 = vpop.f32.mrb[0].mxu0
    %v401 = vpop.f32.mrb[0].mxu0
    %402 = vdwg.mxu0
    %v403 = vmax.f32 %v398, 0.0
    %v404 = vpack.c.bf16 %v403, %v403
    %s405 = scalar_lea.vmem [#allocation5], 32
    %v406 = vld [vmem:[%s405] sm:$0xf]
    %v407 = vld [vmem:[%s405 + $0x4] sm:$0xf]
    %v408 = vld [vmem:[%s405 + $0x8] sm:$0xf]
    %v409 = vld [vmem:[%s405 + $0xc] sm:$0xf]
    %v414 = vunpack.c.l.b16 %v406
    %v415 = vunpack.c.l.b16 %v407
    %v416 = vunpack.c.l.b16 %v408
    %v417 = vunpack.c.l.b16 %v409
    %v418 = vpack.c.b16 %v415, %v414
    %v419 = vpack.c.b16 %v417, %v416
    %v423 = vsel %vm254, %v404, 0
    %425 = vmatprep.subr.bf16.mxu0 0
    %426 = vmatpush1.bf16.msra.mxu0 %v418
    %427 = vmatprep.subr.bf16.mxu0 0
    %428 = vmatpush1.bf16.msra.mxu0 %v419
    %429 = vmatprep.subr.bf16.mxu0 0
    %430 = vmatpush1.bf16.msra.mxu0 0
    %431 = vmatprep.subr.bf16.mxu0 0
    %432 = vmatpush1.bf16.msra.mxu0 0
    %433 = vmatprep.subr.bf16.mxu0 0
    %434 = vmatpush1.bf16.msra.mxu0 0
    %435 = vmatprep.subr.bf16.mxu0 0
    %436 = vmatpush1.bf16.msra.mxu0 0
    %437 = vmatprep.subr.bf16.mxu0 0
    %438 = vmatpush1.bf16.msra.mxu0 0
    %439 = vmatprep.subr.bf16.mxu0 0
    %440 = vmatpush1.bf16.msra.mxu0 0
    %441 = vmatprep.subr.bf16.mxu0 0
    %442 = vmatpush1.bf16.msra.mxu0 0
    %443 = vmatprep.subr.bf16.mxu0 0
    %444 = vmatpush1.bf16.msra.mxu0 0
    %445 = vmatprep.subr.bf16.mxu0 0
    %446 = vmatpush1.bf16.msra.mxu0 0
    %447 = vmatprep.subr.bf16.mxu0 0
    %448 = vmatpush1.bf16.msra.mxu0 0
    %449 = vmatprep.subr.bf16.mxu0 0
    %450 = vmatpush1.bf16.msra.mxu0 0
    %451 = vmatprep.subr.bf16.mxu0 0
    %452 = vmatpush1.bf16.msra.mxu0 0
    %453 = vmatprep.subr.bf16.mxu0 0
    %454 = vmatpush1.bf16.msra.mxu0 0
    %455 = vmatprep.subr.bf16.mxu0 0
    %456 = vmatpush1.bf16.msra.mxu0 0
    %457 = vmatprep.mubr.bf16.mxu0 0
    %458 = vmatmul.mubr.bf16.gmra.mrb[0].mxu0 %v423
    %v459 = vpop.f32.mrb[0].mxu0
    %v460 = vadd.f32 0.0, %v459
    %v461 = vpop.f32.mrb[0].mxu0
    %v462 = vpop.f32.mrb[0].mxu0
    %v463 = vpop.f32.mrb[0].mxu0
    %464 = vdwg.mxu0
    %v465 = vadd.f32 %v348, %v460
    %466 = vset.pattern.permute.xlu0 3
    %467 = vperm.xlu0 %466, %v116
    %v468 = vpop.permute.xlu0 %467
    %vm469 = vcmp.eq.s32.totalorder %v118, %v468
    %v470 = vsel %vm469, 1, 0
    %v471 = vcvt.s32.f32 %v470
    %v472 = vpack.c.bf16 %v471, %v471
    %v474 = vsel %vm131, %v472, 0
    %476 = vmatprep.subr.bf16.mxu0 0
    %477 = vmatpush1.bf16.msra.mxu0 %v137
    %478 = vmatprep.subr.bf16.mxu0 0
    %479 = vmatpush1.bf16.msra.mxu0 0
    %480 = vmatprep.subr.bf16.mxu0 0
    %481 = vmatpush1.bf16.msra.mxu0 0
    %482 = vmatprep.subr.bf16.mxu0 0
    %483 = vmatpush1.bf16.msra.mxu0 0
    %484 = vmatprep.subr.bf16.mxu0 0
    %485 = vmatpush1.bf16.msra.mxu0 0
    %486 = vmatprep.subr.bf16.mxu0 0
    %487 = vmatpush1.bf16.msra.mxu0 0
    %488 = vmatprep.subr.bf16.mxu0 0
    %489 = vmatpush1.bf16.msra.mxu0 0
    %490 = vmatprep.subr.bf16.mxu0 0
    %491 = vmatpush1.bf16.msra.mxu0 0
    %492 = vmatprep.subr.bf16.mxu0 0
    %493 = vmatpush1.bf16.msra.mxu0 0
    %494 = vmatprep.subr.bf16.mxu0 0
    %495 = vmatpush1.bf16.msra.mxu0 0
    %496 = vmatprep.subr.bf16.mxu0 0
    %497 = vmatpush1.bf16.msra.mxu0 0
    %498 = vmatprep.subr.bf16.mxu0 0
    %499 = vmatpush1.bf16.msra.mxu0 0
    %500 = vmatprep.subr.bf16.mxu0 0
    %501 = vmatpush1.bf16.msra.mxu0 0
    %502 = vmatprep.subr.bf16.mxu0 0
    %503 = vmatpush1.bf16.msra.mxu0 0
    %504 = vmatprep.subr.bf16.mxu0 0
    %505 = vmatpush1.bf16.msra.mxu0 0
    %506 = vmatprep.subr.bf16.mxu0 0
    %507 = vmatpush1.bf16.msra.mxu0 0
    %508 = vmatprep.mubr.bf16.mxu0 0
    %509 = vmatmul.mubr.bf16.gmra.mrb[0].mxu0 %v474
    %v510 = vpop.f32.mrb[0].mxu0
    %v511 = vadd.f32 %v109, %v510
    %v512 = vpop.f32.mrb[0].mxu0
    %v513 = vpop.f32.mrb[0].mxu0
    %v514 = vpop.f32.mrb[0].mxu0
    %515 = vdwg.mxu0
    %v516 = vmax.f32 %v511, 0.0
    %v517 = vpack.c.bf16 %v516, %v516
    %s518 = scalar_lea.vmem [#allocation5], 48
    %v519 = vld [vmem:[%s518] sm:$0xf]
    %v520 = vld [vmem:[%s518 + $0x4] sm:$0xf]
    %v521 = vld [vmem:[%s518 + $0x8] sm:$0xf]
    %v522 = vld [vmem:[%s518 + $0xc] sm:$0xf]
    %v527 = vunpack.c.l.b16 %v519
    %v528 = vunpack.c.l.b16 %v520
    %v529 = vunpack.c.l.b16 %v521
    %v530 = vunpack.c.l.b16 %v522
    %v531 = vpack.c.b16 %v528, %v527
    %v532 = vpack.c.b16 %v530, %v529
    %v536 = vsel %vm254, %v517, 0
    %538 = vmatprep.subr.bf16.mxu0 0
    %539 = vmatpush1.bf16.msra.mxu0 %v531
    %540 = vmatprep.subr.bf16.mxu0 0
    %541 = vmatpush1.bf16.msra.mxu0 %v532
    %542 = vmatprep.subr.bf16.mxu0 0
    %543 = vmatpush1.bf16.msra.mxu0 0
    %544 = vmatprep.subr.bf16.mxu0 0
    %545 = vmatpush1.bf16.msra.mxu0 0
    %546 = vmatprep.subr.bf16.mxu0 0
    %547 = vmatpush1.bf16.msra.mxu0 0
    %548 = vmatprep.subr.bf16.mxu0 0
    %549 = vmatpush1.bf16.msra.mxu0 0
    %550 = vmatprep.subr.bf16.mxu0 0
    %551 = vmatpush1.bf16.msra.mxu0 0
    %552 = vmatprep.subr.bf16.mxu0 0
    %553 = vmatpush1.bf16.msra.mxu0 0
    %554 = vmatprep.subr.bf16.mxu0 0
    %555 = vmatpush1.bf16.msra.mxu0 0
    %556 = vmatprep.subr.bf16.mxu0 0
    %557 = vmatpush1.bf16.msra.mxu0 0
    %558 = vmatprep.subr.bf16.mxu0 0
    %559 = vmatpush1.bf16.msra.mxu0 0
    %560 = vmatprep.subr.bf16.mxu0 0
    %561 = vmatpush1.bf16.msra.mxu0 0
    %562 = vmatprep.subr.bf16.mxu0 0
    %563 = vmatpush1.bf16.msra.mxu0 0
    %564 = vmatprep.subr.bf16.mxu0 0
    %565 = vmatpush1.bf16.msra.mxu0 0
    %566 = vmatprep.subr.bf16.mxu0 0
    %567 = vmatpush1.bf16.msra.mxu0 0
    %568 = vmatprep.subr.bf16.mxu0 0
    %569 = vmatpush1.bf16.msra.mxu0 0
    %570 = vmatprep.mubr.bf16.mxu0 0
    %571 = vmatmul.mubr.bf16.gmra.mrb[0].mxu0 %v536
    %v572 = vpop.f32.mrb[0].mxu0
    %v573 = vadd.f32 0.0, %v572
    %v574 = vpop.f32.mrb[0].mxu0
    %v575 = vpop.f32.mrb[0].mxu0
    %v576 = vpop.f32.mrb[0].mxu0
    %577 = vdwg.mxu0
    %v578 = vadd.f32 %v465, %v573
    %579 = vset.pattern.permute.xlu0 4
    %580 = vperm.xlu0 %579, %v116
    %v581 = vpop.permute.xlu0 %580
    %vm582 = vcmp.eq.s32.totalorder %v118, %v581
    %v583 = vsel %vm582, 1, 0
    %v584 = vcvt.s32.f32 %v583
    %v585 = vpack.c.bf16 %v584, %v584
    %v587 = vsel %vm131, %v585, 0
    %589 = vmatprep.subr.bf16.mxu0 0
    %590 = vmatpush1.bf16.msra.mxu0 %v137
    %591 = vmatprep.subr.bf16.mxu0 0
    %592 = vmatpush1.bf16.msra.mxu0 0
    %593 = vmatprep.subr.bf16.mxu0 0
    %594 = vmatpush1.bf16.msra.mxu0 0
    %595 = vmatprep.subr.bf16.mxu0 0
    %596 = vmatpush1.bf16.msra.mxu0 0
    %597 = vmatprep.subr.bf16.mxu0 0
    %598 = vmatpush1.bf16.msra.mxu0 0
    %599 = vmatprep.subr.bf16.mxu0 0
    %600 = vmatpush1.bf16.msra.mxu0 0
    %601 = vmatprep.subr.bf16.mxu0 0
    %602 = vmatpush1.bf16.msra.mxu0 0
    %603 = vmatprep.subr.bf16.mxu0 0
    %604 = vmatpush1.bf16.msra.mxu0 0
    %605 = vmatprep.subr.bf16.mxu0 0
    %606 = vmatpush1.bf16.msra.mxu0 0
    %607 = vmatprep.subr.bf16.mxu0 0
    %608 = vmatpush1.bf16.msra.mxu0 0
    %609 = vmatprep.subr.bf16.mxu0 0
    %610 = vmatpush1.bf16.msra.mxu0 0
    %611 = vmatprep.subr.bf16.mxu0 0
    %612 = vmatpush1.bf16.msra.mxu0 0
    %613 = vmatprep.subr.bf16.mxu0 0
    %614 = vmatpush1.bf16.msra.mxu0 0
    %615 = vmatprep.subr.bf16.mxu0 0
    %616 = vmatpush1.bf16.msra.mxu0 0
    %617 = vmatprep.subr.bf16.mxu0 0
    %618 = vmatpush1.bf16.msra.mxu0 0
    %619 = vmatprep.subr.bf16.mxu0 0
    %620 = vmatpush1.bf16.msra.mxu0 0
    %621 = vmatprep.mubr.bf16.mxu0 0
    %622 = vmatmul.mubr.bf16.gmra.mrb[0].mxu0 %v587
    %v623 = vpop.f32.mrb[0].mxu0
    %v624 = vadd.f32 %v109, %v623
    %v625 = vpop.f32.mrb[0].mxu0
    %v626 = vpop.f32.mrb[0].mxu0
    %v627 = vpop.f32.mrb[0].mxu0
    %628 = vdwg.mxu0
    %v629 = vmax.f32 %v624, 0.0
    %v630 = vpack.c.bf16 %v629, %v629
    %s631 = scalar_lea.vmem [#allocation5], 64
    %v632 = vld [vmem:[%s631] sm:$0xf]
    %v633 = vld [vmem:[%s631 + $0x4] sm:$0xf]
    %v634 = vld [vmem:[%s631 + $0x8] sm:$0xf]
    %v635 = vld [vmem:[%s631 + $0xc] sm:$0xf]
    %v640 = vunpack.c.l.b16 %v632
    %v641 = vunpack.c.l.b16 %v633
    %v642 = vunpack.c.l.b16 %v634
    %v643 = vunpack.c.l.b16 %v635
    %v644 = vpack.c.b16 %v641, %v640
    %v645 = vpack.c.b16 %v643, %v642
    %v649 = vsel %vm254, %v630, 0
    %651 = vmatprep.subr.bf16.mxu0 0
    %652 = vmatpush1.bf16.msra.mxu0 %v644
    %653 = vmatprep.subr.bf16.mxu0 0
    %654 = vmatpush1.bf16.msra.mxu0 %v645
    %655 = vmatprep.subr.bf16.mxu0 0
    %656 = vmatpush1.bf16.msra.mxu0 0
    %657 = vmatprep.subr.bf16.mxu0 0
    %658 = vmatpush1.bf16.msra.mxu0 0
    %659 = vmatprep.subr.bf16.mxu0 0
    %660 = vmatpush1.bf16.msra.mxu0 0
    %661 = vmatprep.subr.bf16.mxu0 0
    %662 = vmatpush1.bf16.msra.mxu0 0
    %663 = vmatprep.subr.bf16.mxu0 0
    %664 = vmatpush1.bf16.msra.mxu0 0
    %665 = vmatprep.subr.bf16.mxu0 0
    %666 = vmatpush1.bf16.msra.mxu0 0
    %667 = vmatprep.subr.bf16.mxu0 0
    %668 = vmatpush1.bf16.msra.mxu0 0
    %669 = vmatprep.subr.bf16.mxu0 0
    %670 = vmatpush1.bf16.msra.mxu0 0
    %671 = vmatprep.subr.bf16.mxu0 0
    %672 = vmatpush1.bf16.msra.mxu0 0
    %673 = vmatprep.subr.bf16.mxu0 0
    %674 = vmatpush1.bf16.msra.mxu0 0
    %675 = vmatprep.subr.bf16.mxu0 0
    %676 = vmatpush1.bf16.msra.mxu0 0
    %677 = vmatprep.subr.bf16.mxu0 0
    %678 = vmatpush1.bf16.msra.mxu0 0
    %679 = vmatprep.subr.bf16.mxu0 0
    %680 = vmatpush1.bf16.msra.mxu0 0
    %681 = vmatprep.subr.bf16.mxu0 0
    %682 = vmatpush1.bf16.msra.mxu0 0
    %683 = vmatprep.mubr.bf16.mxu0 0
    %684 = vmatmul.mubr.bf16.gmra.mrb[0].mxu0 %v649
    %v685 = vpop.f32.mrb[0].mxu0
    %v686 = vadd.f32 0.0, %v685
    %v687 = vpop.f32.mrb[0].mxu0
    %v688 = vpop.f32.mrb[0].mxu0
    %v689 = vpop.f32.mrb[0].mxu0
    %690 = vdwg.mxu0
    %v691 = vadd.f32 %v578, %v686
    %692 = vset.pattern.permute.xlu0 5
    %693 = vperm.xlu0 %692, %v116
    %v694 = vpop.permute.xlu0 %693
    %vm695 = vcmp.eq.s32.totalorder %v118, %v694
    %v696 = vsel %vm695, 1, 0
    %v697 = vcvt.s32.f32 %v696
    %v698 = vpack.c.bf16 %v697, %v697
    %v700 = vsel %vm131, %v698, 0
    %702 = vmatprep.subr.bf16.mxu0 0
    %703 = vmatpush1.bf16.msra.mxu0 %v137
    %704 = vmatprep.subr.bf16.mxu0 0
    %705 = vmatpush1.bf16.msra.mxu0 0
    %706 = vmatprep.subr.bf16.mxu0 0
    %707 = vmatpush1.bf16.msra.mxu0 0
    %708 = vmatprep.subr.bf16.mxu0 0
    %709 = vmatpush1.bf16.msra.mxu0 0
    %710 = vmatprep.subr.bf16.mxu0 0
    %711 = vmatpush1.bf16.msra.mxu0 0
    %712 = vmatprep.subr.bf16.mxu0 0
    %713 = vmatpush1.bf16.msra.mxu0 0
    %714 = vmatprep.subr.bf16.mxu0 0
    %715 = vmatpush1.bf16.msra.mxu0 0
    %716 = vmatprep.subr.bf16.mxu0 0
    %717 = vmatpush1.bf16.msra.mxu0 0
    %718 = vmatprep.subr.bf16.mxu0 0
    %719 = vmatpush1.bf16.msra.mxu0 0
    %720 = vmatprep.subr.bf16.mxu0 0
    %721 = vmatpush1.bf16.msra.mxu0 0
    %722 = vmatprep.subr.bf16.mxu0 0
    %723 = vmatpush1.bf16.msra.mxu0 0
    %724 = vmatprep.subr.bf16.mxu0 0
    %725 = vmatpush1.bf16.msra.mxu0 0
    %726 = vmatprep.subr.bf16.mxu0 0
    %727 = vmatpush1.bf16.msra.mxu0 0
    %728 = vmatprep.subr.bf16.mxu0 0
    %729 = vmatpush1.bf16.msra.mxu0 0
    %730 = vmatprep.subr.bf16.mxu0 0
    %731 = vmatpush1.bf16.msra.mxu0 0
    %732 = vmatprep.subr.bf16.mxu0 0
    %733 = vmatpush1.bf16.msra.mxu0 0
    %734 = vmatprep.mubr.bf16.mxu0 0
    %735 = vmatmul.mubr.bf16.gmra.mrb[0].mxu0 %v700
    %v736 = vpop.f32.mrb[0].mxu0
    %v737 = vadd.f32 %v109, %v736
    %v738 = vpop.f32.mrb[0].mxu0
    %v739 = vpop.f32.mrb[0].mxu0
    %v740 = vpop.f32.mrb[0].mxu0
    %741 = vdwg.mxu0
    %v742 = vmax.f32 %v737, 0.0
    %v743 = vpack.c.bf16 %v742, %v742
    %s744 = scalar_lea.vmem [#allocation5], 80
    %v745 = vld [vmem:[%s744] sm:$0xf]
    %v746 = vld [vmem:[%s744 + $0x4] sm:$0xf]
    %v747 = vld [vmem:[%s744 + $0x8] sm:$0xf]
    %v748 = vld [vmem:[%s744 + $0xc] sm:$0xf]
    %v753 = vunpack.c.l.b16 %v745
    %v754 = vunpack.c.l.b16 %v746
    %v755 = vunpack.c.l.b16 %v747
    %v756 = vunpack.c.l.b16 %v748
    %v757 = vpack.c.b16 %v754, %v753
    %v758 = vpack.c.b16 %v756, %v755
    %v762 = vsel %vm254, %v743, 0
    %764 = vmatprep.subr.bf16.mxu0 0
    %765 = vmatpush1.bf16.msra.mxu0 %v757
    %766 = vmatprep.subr.bf16.mxu0 0
    %767 = vmatpush1.bf16.msra.mxu0 %v758
    %768 = vmatprep.subr.bf16.mxu0 0
    %769 = vmatpush1.bf16.msra.mxu0 0
    %770 = vmatprep.subr.bf16.mxu0 0
    %771 = vmatpush1.bf16.msra.mxu0 0
    %772 = vmatprep.subr.bf16.mxu0 0
    %773 = vmatpush1.bf16.msra.mxu0 0
    %774 = vmatprep.subr.bf16.mxu0 0
    %775 = vmatpush1.bf16.msra.mxu0 0
    %776 = vmatprep.subr.bf16.mxu0 0
    %777 = vmatpush1.bf16.msra.mxu0 0
    %778 = vmatprep.subr.bf16.mxu0 0
    %779 = vmatpush1.bf16.msra.mxu0 0
    %780 = vmatprep.subr.bf16.mxu0 0
    %781 = vmatpush1.bf16.msra.mxu0 0
    %782 = vmatprep.subr.bf16.mxu0 0
    %783 = vmatpush1.bf16.msra.mxu0 0
    %784 = vmatprep.subr.bf16.mxu0 0
    %785 = vmatpush1.bf16.msra.mxu0 0
    %786 = vmatprep.subr.bf16.mxu0 0
    %787 = vmatpush1.bf16.msra.mxu0 0
    %788 = vmatprep.subr.bf16.mxu0 0
    %789 = vmatpush1.bf16.msra.mxu0 0
    %790 = vmatprep.subr.bf16.mxu0 0
    %791 = vmatpush1.bf16.msra.mxu0 0
    %792 = vmatprep.subr.bf16.mxu0 0
    %793 = vmatpush1.bf16.msra.mxu0 0
    %794 = vmatprep.subr.bf16.mxu0 0
    %795 = vmatpush1.bf16.msra.mxu0 0
    %796 = vmatprep.mubr.bf16.mxu0 0
    %797 = vmatmul.mubr.bf16.gmra.mrb[0].mxu0 %v762
    %v798 = vpop.f32.mrb[0].mxu0
    %v799 = vadd.f32 0.0, %v798
    %v800 = vpop.f32.mrb[0].mxu0
    %v801 = vpop.f32.mrb[0].mxu0
    %v802 = vpop.f32.mrb[0].mxu0
    %803 = vdwg.mxu0
    %v804 = vadd.f32 %v691, %v799
    %805 = vset.pattern.permute.xlu0 6
    %806 = vperm.xlu0 %805, %v116
    %v807 = vpop.permute.xlu0 %806
    %vm808 = vcmp.eq.s32.totalorder %v118, %v807
    %v809 = vsel %vm808, 1, 0
    %v810 = vcvt.s32.f32 %v809
    %v811 = vpack.c.bf16 %v810, %v810
    %v813 = vsel %vm131, %v811, 0
    %815 = vmatprep.subr.bf16.mxu0 0
    %816 = vmatpush1.bf16.msra.mxu0 %v137
    %817 = vmatprep.subr.bf16.mxu0 0
    %818 = vmatpush1.bf16.msra.mxu0 0
    %819 = vmatprep.subr.bf16.mxu0 0
    %820 = vmatpush1.bf16.msra.mxu0 0
    %821 = vmatprep.subr.bf16.mxu0 0
    %822 = vmatpush1.bf16.msra.mxu0 0
    %823 = vmatprep.subr.bf16.mxu0 0
    %824 = vmatpush1.bf16.msra.mxu0 0
    %825 = vmatprep.subr.bf16.mxu0 0
    %826 = vmatpush1.bf16.msra.mxu0 0
    %827 = vmatprep.subr.bf16.mxu0 0
    %828 = vmatpush1.bf16.msra.mxu0 0
    %829 = vmatprep.subr.bf16.mxu0 0
    %830 = vmatpush1.bf16.msra.mxu0 0
    %831 = vmatprep.subr.bf16.mxu0 0
    %832 = vmatpush1.bf16.msra.mxu0 0
    %833 = vmatprep.subr.bf16.mxu0 0
    %834 = vmatpush1.bf16.msra.mxu0 0
    %835 = vmatprep.subr.bf16.mxu0 0
    %836 = vmatpush1.bf16.msra.mxu0 0
    %837 = vmatprep.subr.bf16.mxu0 0
    %838 = vmatpush1.bf16.msra.mxu0 0
    %839 = vmatprep.subr.bf16.mxu0 0
    %840 = vmatpush1.bf16.msra.mxu0 0
    %841 = vmatprep.subr.bf16.mxu0 0
    %842 = vmatpush1.bf16.msra.mxu0 0
    %843 = vmatprep.subr.bf16.mxu0 0
    %844 = vmatpush1.bf16.msra.mxu0 0
    %845 = vmatprep.subr.bf16.mxu0 0
    %846 = vmatpush1.bf16.msra.mxu0 0
    %847 = vmatprep.mubr.bf16.mxu0 0
    %848 = vmatmul.mubr.bf16.gmra.mrb[0].mxu0 %v813
    %v849 = vpop.f32.mrb[0].mxu0
    %v850 = vadd.f32 %v109, %v849
    %v851 = vpop.f32.mrb[0].mxu0
    %v852 = vpop.f32.mrb[0].mxu0
    %v853 = vpop.f32.mrb[0].mxu0
    %854 = vdwg.mxu0
    %v855 = vmax.f32 %v850, 0.0
    %v856 = vpack.c.bf16 %v855, %v855
    %s857 = scalar_lea.vmem [#allocation5], 96
    %v858 = vld [vmem:[%s857] sm:$0xf]
    %v859 = vld [vmem:[%s857 + $0x4] sm:$0xf]
    %v860 = vld [vmem:[%s857 + $0x8] sm:$0xf]
    %v861 = vld [vmem:[%s857 + $0xc] sm:$0xf]
    %v866 = vunpack.c.l.b16 %v858
    %v867 = vunpack.c.l.b16 %v859
    %v868 = vunpack.c.l.b16 %v860
    %v869 = vunpack.c.l.b16 %v861
    %v870 = vpack.c.b16 %v867, %v866
    %v871 = vpack.c.b16 %v869, %v868
    %v875 = vsel %vm254, %v856, 0
    %877 = vmatprep.subr.bf16.mxu0 0
    %878 = vmatpush1.bf16.msra.mxu0 %v870
    %879 = vmatprep.subr.bf16.mxu0 0
    %880 = vmatpush1.bf16.msra.mxu0 %v871
    %881 = vmatprep.subr.bf16.mxu0 0
    %882 = vmatpush1.bf16.msra.mxu0 0
    %883 = vmatprep.subr.bf16.mxu0 0
    %884 = vmatpush1.bf16.msra.mxu0 0
    %885 = vmatprep.subr.bf16.mxu0 0
    %886 = vmatpush1.bf16.msra.mxu0 0
    %887 = vmatprep.subr.bf16.mxu0 0
    %888 = vmatpush1.bf16.msra.mxu0 0
    %889 = vmatprep.subr.bf16.mxu0 0
    %890 = vmatpush1.bf16.msra.mxu0 0
    %891 = vmatprep.subr.bf16.mxu0 0
    %892 = vmatpush1.bf16.msra.mxu0 0
    %893 = vmatprep.subr.bf16.mxu0 0
    %894 = vmatpush1.bf16.msra.mxu0 0
    %895 = vmatprep.subr.bf16.mxu0 0
    %896 = vmatpush1.bf16.msra.mxu0 0
    %897 = vmatprep.subr.bf16.mxu0 0
    %898 = vmatpush1.bf16.msra.mxu0 0
    %899 = vmatprep.subr.bf16.mxu0 0
    %900 = vmatpush1.bf16.msra.mxu0 0
    %901 = vmatprep.subr.bf16.mxu0 0
    %902 = vmatpush1.bf16.msra.mxu0 0
    %903 = vmatprep.subr.bf16.mxu0 0
    %904 = vmatpush1.bf16.msra.mxu0 0
    %905 = vmatprep.subr.bf16.mxu0 0
    %906 = vmatpush1.bf16.msra.mxu0 0
    %907 = vmatprep.subr.bf16.mxu0 0
    %908 = vmatpush1.bf16.msra.mxu0 0
    %909 = vmatprep.mubr.bf16.mxu0 0
    %910 = vmatmul.mubr.bf16.gmra.mrb[0].mxu0 %v875
    %v911 = vpop.f32.mrb[0].mxu0
    %v912 = vadd.f32 0.0, %v911
    %v913 = vpop.f32.mrb[0].mxu0
    %v914 = vpop.f32.mrb[0].mxu0
    %v915 = vpop.f32.mrb[0].mxu0
    %916 = vdwg.mxu0
    %v917 = vadd.f32 %v804, %v912
    %918 = vset.pattern.permute.xlu0 7
    %919 = vperm.xlu0 %918, %v116
    %v920 = vpop.permute.xlu0 %919
    %vm921 = vcmp.eq.s32.totalorder %v118, %v920
    %v922 = vsel %vm921, 1, 0
    %v923 = vcvt.s32.f32 %v922
    %v924 = vpack.c.bf16 %v923, %v923
    %v926 = vsel %vm131, %v924, 0
    %928 = vmatprep.subr.bf16.mxu0 0
    %929 = vmatpush1.bf16.msra.mxu0 %v137
    %930 = vmatprep.subr.bf16.mxu0 0
    %931 = vmatpush1.bf16.msra.mxu0 0
    %932 = vmatprep.subr.bf16.mxu0 0
    %933 = vmatpush1.bf16.msra.mxu0 0
    %934 = vmatprep.subr.bf16.mxu0 0
    %935 = vmatpush1.bf16.msra.mxu0 0
    %936 = vmatprep.subr.bf16.mxu0 0
    %937 = vmatpush1.bf16.msra.mxu0 0
    %938 = vmatprep.subr.bf16.mxu0 0
    %939 = vmatpush1.bf16.msra.mxu0 0
    %940 = vmatprep.subr.bf16.mxu0 0
    %941 = vmatpush1.bf16.msra.mxu0 0
    %942 = vmatprep.subr.bf16.mxu0 0
    %943 = vmatpush1.bf16.msra.mxu0 0
    %944 = vmatprep.subr.bf16.mxu0 0
    %945 = vmatpush1.bf16.msra.mxu0 0
    %946 = vmatprep.subr.bf16.mxu0 0
    %947 = vmatpush1.bf16.msra.mxu0 0
    %948 = vmatprep.subr.bf16.mxu0 0
    %949 = vmatpush1.bf16.msra.mxu0 0
    %950 = vmatprep.subr.bf16.mxu0 0
    %951 = vmatpush1.bf16.msra.mxu0 0
    %952 = vmatprep.subr.bf16.mxu0 0
    %953 = vmatpush1.bf16.msra.mxu0 0
    %954 = vmatprep.subr.bf16.mxu0 0
    %955 = vmatpush1.bf16.msra.mxu0 0
    %956 = vmatprep.subr.bf16.mxu0 0
    %957 = vmatpush1.bf16.msra.mxu0 0
    %958 = vmatprep.subr.bf16.mxu0 0
    %959 = vmatpush1.bf16.msra.mxu0 0
    %960 = vmatprep.mubr.bf16.mxu0 0
    %961 = vmatmul.mubr.bf16.gmra.mrb[0].mxu0 %v926
    %v962 = vpop.f32.mrb[0].mxu0
    %v963 = vadd.f32 %v109, %v962
    %v964 = vpop.f32.mrb[0].mxu0
    %v965 = vpop.f32.mrb[0].mxu0
    %v966 = vpop.f32.mrb[0].mxu0
    %967 = vdwg.mxu0
    %v968 = vmax.f32 %v963, 0.0
    %v969 = vpack.c.bf16 %v968, %v968
    %s970 = scalar_lea.vmem [#allocation5], 112
    %v971 = vld [vmem:[%s970] sm:$0xf]
    %v972 = vld [vmem:[%s970 + $0x4] sm:$0xf]
    %v973 = vld [vmem:[%s970 + $0x8] sm:$0xf]
    %v974 = vld [vmem:[%s970 + $0xc] sm:$0xf]
    %v979 = vunpack.c.l.b16 %v971
    %v980 = vunpack.c.l.b16 %v972
    %v981 = vunpack.c.l.b16 %v973
    %v982 = vunpack.c.l.b16 %v974
    %v983 = vpack.c.b16 %v980, %v979
    %v984 = vpack.c.b16 %v982, %v981
    %v988 = vsel %vm254, %v969, 0
    %990 = vmatprep.subr.bf16.mxu0 0
    %991 = vmatpush1.bf16.msra.mxu0 %v983
    %992 = vmatprep.subr.bf16.mxu0 0
    %993 = vmatpush1.bf16.msra.mxu0 %v984
    %994 = vmatprep.subr.bf16.mxu0 0
    %995 = vmatpush1.bf16.msra.mxu0 0
    %996 = vmatprep.subr.bf16.mxu0 0
    %997 = vmatpush1.bf16.msra.mxu0 0
    %998 = vmatprep.subr.bf16.mxu0 0
    %999 = vmatpush1.bf16.msra.mxu0 0
    %1000 = vmatprep.subr.bf16.mxu0 0
    %1001 = vmatpush1.bf16.msra.mxu0 0
    %1002 = vmatprep.subr.bf16.mxu0 0
    %1003 = vmatpush1.bf16.msra.mxu0 0
    %1004 = vmatprep.subr.bf16.mxu0 0
    %1005 = vmatpush1.bf16.msra.mxu0 0
    %1006 = vmatprep.subr.bf16.mxu0 0
    %1007 = vmatpush1.bf16.msra.mxu0 0
    %1008 = vmatprep.subr.bf16.mxu0 0
    %1009 = vmatpush1.bf16.msra.mxu0 0
    %1010 = vmatprep.subr.bf16.mxu0 0
    %1011 = vmatpush1.bf16.msra.mxu0 0
    %1012 = vmatprep.subr.bf16.mxu0 0
    %1013 = vmatpush1.bf16.msra.mxu0 0
    %1014 = vmatprep.subr.bf16.mxu0 0
    %1015 = vmatpush1.bf16.msra.mxu0 0
    %1016 = vmatprep.subr.bf16.mxu0 0
    %1017 = vmatpush1.bf16.msra.mxu0 0
    %1018 = vmatprep.subr.bf16.mxu0 0
    %1019 = vmatpush1.bf16.msra.mxu0 0
    %1020 = vmatprep.subr.bf16.mxu0 0
    %1021 = vmatpush1.bf16.msra.mxu0 0
    %1022 = vmatprep.mubr.bf16.mxu0 0
    %1023 = vmatmul.mubr.bf16.gmra.mrb[0].mxu0 %v988
    %v1024 = vpop.f32.mrb[0].mxu0
    %v1025 = vadd.f32 0.0, %v1024
    %v1026 = vpop.f32.mrb[0].mxu0
    %v1027 = vpop.f32.mrb[0].mxu0
    %v1028 = vpop.f32.mrb[0].mxu0
    %1029 = vdwg.mxu0
    %v1030 = vadd.f32 %v917, %v1025
    %v1031 = vld [vmem:[%s6] sm:$0x1]
    %v1033 = vlaneseq
    %v1034 = vshrl.u32 %v1033, 7
    %v1035 = vsub.s32 0, %v1034
    %v1036 = vrot.slane %v1031, %v1035
    %v1038 = vadd.f32 %v1030, %v1036
    %vm1039 = vcmask 1043456
    %v1040 = vsel %vm1039, %v1038, -inf
    %1041 = vmax.xlane.f32.xlu0 %v1040
    %v1042 = vpop.xlane.xlu0 %1041
    %v1043 = vsub.f32 %v1038, %v1042
    %v1044 = vmul.f32 %v1043, 1.442695
    %v1045 = vpow.pop %v1044
    %v1046 = vsel %vm1039, %v1045, 0.0
    %1047 = vadd.xlane.f32.xlu0 %v1046
    %v1048 = vpop.xlane.xlu0 %1047
    %v1049 = vrcp.pop %v1048
    %v1050 = vmul.f32 %v1045, %v1049
    %1051 = vst [vmem:[#allocation7] sm:$0xf] %v1050
    // Predicated region
    $region38: #{mlp_forward.1} parent=1 // pred_check
      _
    $region39: #{mlp_forward.1} parent=1 // pred_check_branch
      %1053 = sbr.rel (0) target = $region41
    $region40: #{mlp_forward.1} parent=1 // pred_region
      %s1055 = ssub.s32 64, 64
      %1056 = vsyncadd [#allocation4], %s1055
      %s1058 = sshll.u32 [#allocation7], 4
      %s1059 = int_to_ptr.vmem [resolvable:$true] %s1058
      %1061 = dma.vmem_to_hbm [thread:$0]  %s1059, 64, %s7, [#allocation4]
    $region41: #{mlp_forward.1} parent=1 // pred_fallthru
      _
    // Predicated region
    $region42: #{mlp_forward.1} parent=1 // pred_check
      _
    $region43: #{mlp_forward.1} parent=1 // pred_check_branch
      %1063 = sbr.rel (0) target = $region45
    $region44: #{mlp_forward.1} parent=1 // pred_region
      %1064 = dma.done [#allocation4], 64
    $region45: #{mlp_forward.1} parent=1 // pred_fallthru
      _
    %1065 = vsyncpa [#allocation3], 1
    %1066 = vsyncpa [#allocation6], 1
    %1067 = vsyncpa [#allocation4], 1

</llo_original>
